<compile_context>
chip_gen: v7x
topology: tpu7x:2x2x1
jax: 0.10.0
libtpu: 0.0.40
codegen_flags: <defaults>
</compile_context>

<pallas_src>
import functools

import jax
import jax.numpy as jnp
from jax.experimental import pallas as pl
from jax.experimental.pallas import tpu as pltpu


def _round_up(x: int, m: int) -> int:
    return ((x + m - 1) // m) * m


def _causal_linear_kernel(x_ref, wm_ref, b_ref, o_ref):
    x = x_ref[...]                                    # [TM, Fp]   (input dtype)
    wm = wm_ref[...]                                  # [Fp, Fp]   pre-masked W*A.T
    y = jnp.dot(x, wm, preferred_element_type=jnp.float32)          # MXU, f32 acc
    o_ref[...] = (
        x.astype(jnp.float32) + y + b_ref[...].astype(jnp.float32)  # f32 epilogue
    ).astype(o_ref.dtype)


@functools.partial(jax.jit, static_argnames=())
def causal_linear(x, weight, adjacent_matrix, bias):
    """x: [..., F], weight: [F, F], adjacent_matrix: [F, F], bias: [F]."""
    orig_shape = x.shape
    F = weight.shape[0]
    x2d = x.reshape(-1, F)                            # [M, F]
    M = x2d.shape[0]

    # ---- grid-invariant prep (done once, outside the kernel) ---------------
    masked_w = (weight * adjacent_matrix.T).astype(x.dtype)          # [F, F]

    # ---- pad feature dim to a lane-dense multiple of 128 -------------------
    Fp = _round_up(F, 128)
    # ---- choose M tile: big (1024 rows) when M is big, sublane-aligned otherwise
    TM = min(1024, _round_up(M, 8))
    Mp = _round_up(M, TM)

    x_pad = jnp.pad(x2d, ((0, Mp - M), (0, Fp - F)))                 # [Mp, Fp]
    wm_pad = jnp.pad(masked_w, ((0, Fp - F), (0, Fp - F)))           # [Fp, Fp]
    b_pad = jnp.pad(bias, (0, Fp - F)).reshape(1, Fp)                # [1, Fp]

    grid = (Mp // TM,)
    itemsize = jnp.dtype(x.dtype).itemsize
    cost = pl.CostEstimate(
        flops=2 * Mp * Fp * Fp + 2 * Mp * Fp,
        transcendentals=0,
        bytes_accessed=2 * Mp * Fp * itemsize + Fp * Fp * itemsize + Fp * 4,
    )

    out = pl.pallas_call(
        _causal_linear_kernel,
        out_shape=jax.ShapeDtypeStruct((Mp, Fp), x.dtype),
        grid=grid,
        in_specs=[
            pl.BlockSpec((TM, Fp), lambda i: (i, 0)),   # x: tiled over M
            pl.BlockSpec((Fp, Fp), lambda i: (0, 0)),   # masked W: resident
            pl.BlockSpec((1, Fp), lambda i: (0, 0)),    # bias: resident
        ],
        out_specs=pl.BlockSpec((TM, Fp), lambda i: (i, 0)),
        compiler_params=pltpu.CompilerParams(
            dimension_semantics=("parallel",),
            vmem_limit_bytes=32 * 1024 * 1024,          # tiny tiles; safe on v5e/v6e/v7x
        ),
        cost_estimate=cost,
    )(x_pad, wm_pad, b_pad)

    return out[:M, :F].reshape(orig_shape)


if __name__ == "__main__":
    num_features = 32
    batch, seq = 2, 8

    key = jax.random.PRNGKey(0)
    k_x, k_w, k_b, k_adj = jax.random.split(key, 4)

    r = num_features ** (-0.5)
    # Deterministic parameter init mirroring torch.rand(...) * 2r - r
    weight = jax.random.uniform(
        k_w, (num_features, num_features), jnp.float32, minval=-r, maxval=r
    )
    bias = jax.random.uniform(k_b, (num_features,), jnp.float32, minval=-r, maxval=r)

    x = jax.random.normal(k_x, (batch, seq, num_features), jnp.float32)
    # Binary adjacency matrix (float), e.g. a causal-style mask
    adjacent_matrix = (
        jax.random.uniform(k_adj, (num_features, num_features), jnp.float32) > 0.5
    ).astype(jnp.float32)

    out = causal_linear(x, weight, adjacent_matrix, bias)
    out = jax.block_until_ready(out)

    # Reference check in plain JAX
    ref = x + x @ (weight * adjacent_matrix.T) + bias
    assert out.shape == x.shape
    assert jnp.allclose(out, ref, atol=1e-5, rtol=1e-5)

    print("KERNEL_OK")
</pallas_src>

<mosaic_0001>
module attributes {stable_mosaic.version = 11 : i64} {
  func.func @_causal_linear_kernel(%arg0: i32, %arg1: memref<16x128xf32, #tpu.memory_space<vmem>>, %arg2: memref<128x128xf32, #tpu.memory_space<vmem>>, %arg3: memref<1x128xf32, #tpu.memory_space<vmem>>, %arg4: memref<16x128xf32, #tpu.memory_space<vmem>>) attributes {dimension_semantics = [#tpu.dimension_semantics<parallel>], iteration_bounds = array<i64: 1>, scalar_prefetch = 0 : i64, scratch_operands = 0 : i64, tpu.core_type = #tpu.core_type<tc>, window_params = [{transform_indices = @transform_0, window_bounds = array<i64: 16, 128>}, {pipeline_mode = #tpu.pipeline_mode<synchronous>, transform_indices = @transform_1, window_bounds = array<i64: 128, 128>}, {pipeline_mode = #tpu.pipeline_mode<synchronous>, transform_indices = @transform_2, window_bounds = array<i64: 1, 128>}, {transform_indices = @transform_3, window_bounds = array<i64: 16, 128>}]} {
    %c0 = arith.constant 0 : index
    %c0_0 = arith.constant 0 : index
    %0 = vector.load %arg1[%c0, %c0_0] : memref<16x128xf32, #tpu.memory_space<vmem>>, vector<16x128xf32>
    %c0_1 = arith.constant 0 : index
    %c0_2 = arith.constant 0 : index
    %1 = vector.load %arg2[%c0_1, %c0_2] : memref<128x128xf32, #tpu.memory_space<vmem>>, vector<128x128xf32>
    %cst = arith.constant dense<0.000000e+00> : vector<16x128xf32>
    %2 = tpu.matmul %0, %1, %cst {dimension_numbers = #tpu.dot_dimension_numbers<[1], [0], [0], [1], [0, 0, 1, 1], [], []>} : vector<16x128xf32>, vector<128x128xf32>, vector<16x128xf32> -> vector<16x128xf32>
    %3 = arith.addf %0, %2 : vector<16x128xf32>
    %c0_3 = arith.constant 0 : index
    %c0_4 = arith.constant 0 : index
    %4 = vector.load %arg3[%c0_3, %c0_4] : memref<1x128xf32, #tpu.memory_space<vmem>>, vector<1x128xf32>
    %5 = vector.broadcast %4 : vector<1x128xf32> to vector<16x128xf32>
    %6 = arith.addf %3, %5 : vector<16x128xf32>
    %c0_5 = arith.constant 0 : index
    %c0_6 = arith.constant 0 : index
    %7 = vector.load %arg4[%c0_5, %c0_6] : memref<16x128xf32, #tpu.memory_space<vmem>>, vector<16x128xf32>
    tpu.vector_store %arg4[%c0_5, %c0_6], %6 {strides = array<i32>} : memref<16x128xf32, #tpu.memory_space<vmem>>, vector<16x128xf32>,
    return
  }
  func.func @transform_0(%arg0: i32) -> (i32, i32) {
    %c0_i32 = arith.constant 0 : i32
    %c0_i32_0 = arith.constant 0 : i32
    return %arg0, %c0_i32 : i32, i32
  }
  func.func @transform_1(%arg0: i32) -> (i32, i32) {
    %c0_i32 = arith.constant 0 : i32
    %c0_i32_0 = arith.constant 0 : i32
    %c0_i32_1 = arith.constant 0 : i32
    return %c0_i32, %c0_i32_0 : i32, i32
  }
  func.func @transform_2(%arg0: i32) -> (i32, i32) {
    %c0_i32 = arith.constant 0 : i32
    %c0_i32_0 = arith.constant 0 : i32
    %c0_i32_1 = arith.constant 0 : i32
    return %c0_i32, %c0_i32_0 : i32, i32
  }
  func.func @transform_3(%arg0: i32) -> (i32, i32) {
    %c0_i32 = arith.constant 0 : i32
    %c0_i32_0 = arith.constant 0 : i32
    return %arg0, %c0_i32 : i32, i32
  }
}

</mosaic_0001>

<llo_original>
// kernel: causal_linear.1
$region0: #{causal_linear.1}
  #allocation0 [shape = 'u32[]', space=smem, size = 0x4, offset = 0x4, fixed_abs, tag = 'smem constant byte address 0x4 - core index']
  #allocation1 [shape = 'u32[144,128]{1,0:T(1,128)}', space=vmem, size = 0x12000, scoped, tag = 'internal scratch']
  %s0 = inlined_call_operand.vmem [shape: f32[16,128], index: 0, kind: input, shape index: {}]
  %s1 = inlined_call_operand.vmem [shape: f32[128,128], index: 1, kind: input, shape index: {}]
  %s2 = inlined_call_operand.vmem [shape: f32[1,128], index: 2, kind: input, shape index: {}]
  %s3 = inlined_call_operand.vmem [shape: f32[16,128], index: 3, kind: output, shape index: {}]
  %s4 = sld [smem:[#allocation0]]
  $region22: #{causal_linear.1} parent=0
    _
  %s6 = ssub.s32 1, %s4
  %s7 = scalar_select 0, %s6, %s4
  // Predicated region
  $region2: #{causal_linear.1} parent=0 // pred_check
    _
  $region3: #{causal_linear.1} parent=0 // pred_check_branch
    %9 = sbr.rel (0) target = $region5
  $region4: #{causal_linear.1} parent=0 // pred_region
    _
  $region5: #{causal_linear.1} parent=0 // pred_fallthru
    _
  // Predicated region
  $region6: #{causal_linear.1} parent=0 // pred_check
    _
  $region7: #{causal_linear.1} parent=0 // pred_check_branch
    %11 = sbr.rel (0) target = $region9
  $region8: #{causal_linear.1} parent=0 // pred_region
    _
  $region9: #{causal_linear.1} parent=0 // pred_fallthru
    _
  // Predicated region
  $region10: #{causal_linear.1} parent=0 // pred_check
    _
  $region11: #{causal_linear.1} parent=0 // pred_check_branch
    %13 = sbr.rel (0) target = $region13
  $region12: #{causal_linear.1} parent=0 // pred_region
    _
  $region13: #{causal_linear.1} parent=0 // pred_fallthru
    _
  %v14 = vld [vmem:[%s0] sm:$0xff]
  %v15 = vld [vmem:[%s0 + $0x8] sm:$0xff]
  %v16 = vld [vmem:[%s1] sm:$0xff]
  %v17 = vld [vmem:[%s1 + $0x8] sm:$0xff]
  %v18 = vld [vmem:[%s1 + $0x10] sm:$0xff]
  %v19 = vld [vmem:[%s1 + $0x18] sm:$0xff]
  %v20 = vld [vmem:[%s1 + $0x20] sm:$0xff]
  %v21 = vld [vmem:[%s1 + $0x28] sm:$0xff]
  %v22 = vld [vmem:[%s1 + $0x30] sm:$0xff]
  %v23 = vld [vmem:[%s1 + $0x38] sm:$0xff]
  %v24 = vld [vmem:[%s1 + $0x40] sm:$0xff]
  %v25 = vld [vmem:[%s1 + $0x48] sm:$0xff]
  %v26 = vld [vmem:[%s1 + $0x50] sm:$0xff]
  %v27 = vld [vmem:[%s1 + $0x58] sm:$0xff]
  %v28 = vld [vmem:[%s1 + $0x60] sm:$0xff]
  %v29 = vld [vmem:[%s1 + $0x68] sm:$0xff]
  %v30 = vld [vmem:[%s1 + $0x70] sm:$0xff]
  %v31 = vld [vmem:[%s1 + $0x78] sm:$0xff]
  %32 = vmatprep.subr.mxu0 0.0
  %33 = vmatpush1.msra.mxu0 %v16
  %34 = vmatprep.subr.mxu0 0.0
  %35 = vmatpush1.msra.mxu0 %v17
  %36 = vmatprep.subr.mxu0 0.0
  %37 = vmatpush1.msra.mxu0 %v18
  %38 = vmatprep.subr.mxu0 0.0
  %39 = vmatpush1.msra.mxu0 %v19
  %40 = vmatprep.subr.mxu0 0.0
  %41 = vmatpush1.msra.mxu0 %v20
  %42 = vmatprep.subr.mxu0 0.0
  %43 = vmatpush1.msra.mxu0 %v21
  %44 = vmatprep.subr.mxu0 0.0
  %45 = vmatpush1.msra.mxu0 %v22
  %46 = vmatprep.subr.mxu0 0.0
  %47 = vmatpush1.msra.mxu0 %v23
  %48 = vmatprep.subr.mxu0 0.0
  %49 = vmatpush1.msra.mxu0 %v24
  %50 = vmatprep.subr.mxu0 0.0
  %51 = vmatpush1.msra.mxu0 %v25
  %52 = vmatprep.subr.mxu0 0.0
  %53 = vmatpush1.msra.mxu0 %v26
  %54 = vmatprep.subr.mxu0 0.0
  %55 = vmatpush1.msra.mxu0 %v27
  %56 = vmatprep.subr.mxu0 0.0
  %57 = vmatpush1.msra.mxu0 %v28
  %58 = vmatprep.subr.mxu0 0.0
  %59 = vmatpush1.msra.mxu0 %v29
  %60 = vmatprep.subr.mxu0 0.0
  %61 = vmatpush1.msra.mxu0 %v30
  %62 = vmatprep.subr.mxu0 0.0
  %63 = vmatpush1.msra.mxu0 %v31
  %64 = vmatprep.subr.mxu0 0.0
  %65 = vmatpush1.msra.mxu0 0.0
  %66 = vmatprep.subr.mxu0 0.0
  %67 = vmatpush1.msra.mxu0 0.0
  %68 = vmatprep.subr.mxu0 0.0
  %69 = vmatpush1.msra.mxu0 0.0
  %70 = vmatprep.subr.mxu0 0.0
  %71 = vmatpush1.msra.mxu0 0.0
  %72 = vmatprep.subr.mxu0 0.0
  %73 = vmatpush1.msra.mxu0 0.0
  %74 = vmatprep.subr.mxu0 0.0
  %75 = vmatpush1.msra.mxu0 0.0
  %76 = vmatprep.subr.mxu0 0.0
  %77 = vmatpush1.msra.mxu0 0.0
  %78 = vmatprep.subr.mxu0 0.0
  %79 = vmatpush1.msra.mxu0 0.0
  %80 = vmatprep.subr.mxu0 0.0
  %81 = vmatpush1.msra.mxu0 0.0
  %82 = vmatprep.subr.mxu0 0.0
  %83 = vmatpush1.msra.mxu0 0.0
  %84 = vmatprep.subr.mxu0 0.0
  %85 = vmatpush1.msra.mxu0 0.0
  %86 = vmatprep.subr.mxu0 0.0
  %87 = vmatpush1.msra.mxu0 0.0
  %88 = vmatprep.subr.mxu0 0.0
  %89 = vmatpush1.msra.mxu0 0.0
  %90 = vmatprep.subr.mxu0 0.0
  %91 = vmatpush1.msra.mxu0 0.0
  %92 = vmatprep.subr.mxu0 0.0
  %93 = vmatpush1.msra.mxu0 0.0
  %94 = vmatprep.subr.mxu0 0.0
  %95 = vmatpush1.msra.mxu0 0.0
  %96 = vmatprep.mubr.f32.mxu0 0.0
  %97 = vmatmul.mubr.f32.gmra.mrb[0].mxu0 %v14
  %v98 = vpop.f32.mrb[0].mxu0
  %v99 = vadd.f32 0.0, %v98
  %v100 = vpop.f32.mrb[0].mxu0
  %101 = vmatprep.mubr.f32.mxu0 0.0
  %102 = vmatmul.mubr.f32.gmra.mrb[0].mxu0 %v15
  %v103 = vpop.f32.mrb[0].mxu0
  %v104 = vadd.f32 0.0, %v103
  %v105 = vpop.f32.mrb[0].mxu0
  %106 = vdwg.mxu0
  %v107 = vadd.f32 %v14, %v99
  %v108 = vadd.f32 %v15, %v104
  %v109 = vld [vmem:[%s2] sm:$0x1]
  %v111 = vlaneseq
  %v112 = vshrl.u32 %v111, 7
  %v113 = vsub.s32 0, %v112
  %v114 = vrot.slane %v109, %v113
  %v116 = vadd.f32 %v107, %v114
  %v117 = vadd.f32 %v108, %v114
  %118 = vst [vmem:[%s3] sm:$0xff] %v116
  %119 = vst [vmem:[%s3 + $0x8] sm:$0xff] %v117
  // Predicated region
  $region14: #{causal_linear.1} parent=0 // pred_check
    _
  $region15: #{causal_linear.1} parent=0 // pred_check_branch
    %121 = sbr.rel (0) target = $region17
  $region16: #{causal_linear.1} parent=0 // pred_region
    _
  $region17: #{causal_linear.1} parent=0 // pred_fallthru
    _
  // Predicated region
  $region18: #{causal_linear.1} parent=0 // pred_check
    _
  $region19: #{causal_linear.1} parent=0 // pred_check_branch
    %123 = sbr.rel (0) target = $region21
  $region20: #{causal_linear.1} parent=0 // pred_region
    _
  $region21: #{causal_linear.1} parent=0 // pred_fallthru
    _

</llo_original>
